<compile_context>
chip_gen: v7x
topology: tpu7x:2x2x1
jax: 0.10.0
libtpu: 0.0.40
codegen_flags: <defaults>
</compile_context>

<pallas_src>
import functools

import jax
import jax.numpy as jnp
from jax.experimental import pallas as pl
from jax.experimental.pallas import tpu as pltpu


def _xent_kernel(logits_ref, labels_ref, out_ref, m_sc, s_sc, g_sc, *,
                 n_classes, n_valid, tc, tn, c_ragged, n_ragged):
    """One (batch-group, N-tile, C-chunk) block.

    logits_ref: (bt, tc, tn)      labels_ref: (bt, 1, tn) int32
    out_ref:    (bt, 1, tn) f32 accumulator, resident across the (n, c) axes.
    m_sc/s_sc/g_sc: (bt, 1, tn) f32 running max / exp-sum / gathered logit.
    """
    n_idx = pl.program_id(1)
    c_idx = pl.program_id(2)
    nt = pl.num_programs(1)
    ct = pl.num_programs(2)

    # Fresh N tile: reset the online-softmax state.
    @pl.when(c_idx == 0)
    def _():
        m_sc[...] = jnp.full_like(m_sc, -jnp.inf)
        s_sc[...] = jnp.zeros_like(s_sc)
        g_sc[...] = jnp.zeros_like(g_sc)

    # First visit of this output block: zero the accumulator.
    @pl.when((c_idx == 0) & (n_idx == 0))
    def _():
        out_ref[...] = jnp.zeros_like(out_ref)

    x = logits_ref[...].astype(jnp.float32)          # (bt, tc, tn): f32 math per tile
    labels = labels_ref[...]                         # (bt, 1, tn) int32

    # Class ids of the sublane rows in this chunk.
    row = c_idx * tc + jax.lax.broadcasted_iota(jnp.int32, x.shape, 1)

    # Ragged last C chunk: out-of-range rows must not pollute max / exp-sum.
    if c_ragged:
        x_m = jnp.where(row < n_classes, x, -jnp.inf)
    else:
        x_m = x

    # Online max / exp-sum update over the class axis (sublanes).
    m_old = m_sc[...]
    m_new = jnp.maximum(m_old, jnp.max(x_m, axis=1, keepdims=True))
    s_sc[...] = (s_sc[...] * jnp.exp(m_old - m_new)
                 + jnp.sum(jnp.exp(x_m - m_new), axis=1, keepdims=True))
    m_sc[...] = m_new
    # Gathered logit x[label] via one-hot select; no (C, N) logprobs temporary.
    g_sc[...] = g_sc[...] + jnp.sum(jnp.where(row == labels, x, 0.0),
                                    axis=1, keepdims=True)

    # Last C chunk: fold this tile's log-softmax-at-label into the accumulator.
    # logprobs[label] = x[label] - m - log(sum exp(x - m))
    last_c = c_idx == ct - 1
    if not n_ragged:
        @pl.when(last_c)
        def _():
            out_ref[...] += g_sc[...] - m_sc[...] - jnp.log(s_sc[...])
    else:
        # Interior tiles: no lane mask needed.
        @pl.when(last_c & (n_idx != nt - 1))
        def _():
            out_ref[...] += g_sc[...] - m_sc[...] - jnp.log(s_sc[...])

        # Last tile: scrub garbage lanes (>= N) AFTER computing the partial.
        @pl.when(last_c & (n_idx == nt - 1))
        def _():
            partial = g_sc[...] - m_sc[...] - jnp.log(s_sc[...])
            lane = jax.lax.broadcasted_iota(jnp.int32, partial.shape, 2)
            valid = (n_idx * tn + lane) < n_valid
            out_ref[...] += jnp.where(valid, partial, 0.0)


def custom_cross_entropy_pallas(logits, labels, *, _max_block_elems=None):
    """logits: (B, C, N) float, labels: (B, N) integer. Scalar f32 loss (mean)."""
    B, C, N = logits.shape
    itemsize = jnp.dtype(logits.dtype).itemsize

    try:
        vmem_cap = int(pltpu.get_tpu_info().vmem_capacity_bytes)
    except Exception:
        vmem_cap = 64 * 1024 * 1024   # conservative (v7x per-TC VMEM)

    # Per-block element budget: double-buffered input (2*itemsize bytes/elem)
    # plus the in-kernel f32 working set (upcast + exp temp ~ 8 bytes/elem).
    footprint_budget = vmem_cap // 2
    bytes_per_elem = 2 * itemsize + 8
    if _max_block_elems is not None:           # test-only override
        max_elems = int(_max_block_elems)
    else:
        max_elems = max(footprint_budget // bytes_per_elem, 8 * 128)

    n_pad = ((N + 127) // 128) * 128

    if C * 128 <= max_elems:
        # Whole class axis fits in one block: pick the widest lane tile that
        # fits the budget, then fold batch rows in while there is room.
        tc = C
        tn = min(n_pad, max(128, (max_elems // C) // 128 * 128))
        bt_cap = max(1, min(B, max_elems // (C * tn)))
        bt = 1
        for d in range(bt_cap, 0, -1):
            if B % d == 0:
                bt = d
                break
    else:
        # Vocab-scale C: chunk the class axis over sublane blocks (online pass).
        tn = min(n_pad, 512)
        tc = max(8, (max_elems // tn) // 8 * 8)
        bt = 1

    ct = (C + tc - 1) // tc
    nt = (N + tn - 1) // tn
    gb = B // bt

    labels3 = labels.astype(jnp.int32).reshape(B, 1, N)

    kernel = functools.partial(
        _xent_kernel, n_classes=C, n_valid=N, tc=tc, tn=tn,
        c_ragged=(C % tc != 0), n_ragged=(N % tn != 0))

    block_elems = bt * tc * tn
    vmem_need = (2 * block_elems * itemsize      # double-buffered logits blocks
                 + 2 * block_elems * 4           # f32 upcast + exp temporary
                 + 2 * bt * tn * 4               # double-buffered labels blocks
                 + 4 * bt * tn * 4               # m/s/g scratch + resident out block
                 + (2 << 20))                    # slack
    vmem_limit = int(min(max(vmem_need, 16 << 20),
                         max(vmem_cap - (8 << 20), 32 << 20)))

    partials = pl.pallas_call(
        kernel,
        out_shape=jax.ShapeDtypeStruct((B, 1, tn), jnp.float32),
        grid_spec=pltpu.PrefetchScalarGridSpec(
            num_scalar_prefetch=0,
            grid=(gb, nt, ct),
            in_specs=[
                pl.BlockSpec((bt, tc, tn), lambda b, n, c: (b, c, n)),
                pl.BlockSpec((bt, 1, tn), lambda b, n, c: (b, 0, n)),
            ],
            out_specs=pl.BlockSpec((bt, 1, tn), lambda b, n, c: (b, 0, 0)),
            scratch_shapes=[
                pltpu.VMEM((bt, 1, tn), jnp.float32),   # running max
                pltpu.VMEM((bt, 1, tn), jnp.float32),   # running exp-sum
                pltpu.VMEM((bt, 1, tn), jnp.float32),   # gathered logit
            ],
        ),
        compiler_params=pltpu.CompilerParams(
            dimension_semantics=("parallel", "arbitrary", "arbitrary"),
            vmem_limit_bytes=vmem_limit,
        ),
    )(logits, labels3)

    # -mean over the B*N gathered logprobs (padding lanes contribute exactly 0).
    return -(jnp.sum(partials) / jnp.float32(B * N))


def _reference(logits, labels):
    # Pure-JAX reference mirroring the PyTorch module (f32).
    x = logits.astype(jnp.float32)
    soft = jax.nn.softmax(x, axis=-2)
    logprobs = jnp.log(soft / jnp.sum(soft, axis=-2, keepdims=True))
    picked = jnp.take_along_axis(logprobs, labels.astype(jnp.int32)[:, None, :], axis=-2)
    return -jnp.mean(picked.astype(jnp.float32))


if __name__ == "__main__":
    key = jax.random.PRNGKey(0)

    # Test 1: small canonical shape (single block, batch folding, ragged N).
    k1, k2, k3, k4, k5, k6 = jax.random.split(key, 6)
    B, C, N = 2, 8, 16          # batch, classes (dim=-2), positions (last dim)
    logits = jax.random.normal(k1, (B, C, N), dtype=jnp.float32)
    labels = jax.random.randint(k2, (B, N), 0, C, dtype=jnp.int32)
    loss = jax.block_until_ready(custom_cross_entropy_pallas(logits, labels))
    ref = _reference(logits, labels)
    assert jnp.allclose(loss, ref, atol=1e-5, rtol=1e-5), (loss, ref)

    # Test 2: exercises the chunked-C (online softmax) path with ragged C and N
    # by forcing a tiny block budget.
    B2, C2, N2 = 2, 20, 300
    logits2 = jax.random.normal(k3, (B2, C2, N2), dtype=jnp.float32)
    labels2 = jax.random.randint(k4, (B2, N2), 0, C2, dtype=jnp.int32)
    loss2 = jax.block_until_ready(
        custom_cross_entropy_pallas(logits2, labels2, _max_block_elems=2048))
    ref2 = _reference(logits2, labels2)
    assert jnp.allclose(loss2, ref2, atol=1e-5, rtol=1e-5), (loss2, ref2)

    # Test 3: exercises multiple N tiles + cross-tile accumulation with a
    # ragged last tile.
    B3, C3, N3 = 2, 6, 300
    logits3 = jax.random.normal(k5, (B3, C3, N3), dtype=jnp.float32)
    labels3 = jax.random.randint(k6, (B3, N3), 0, C3, dtype=jnp.int32)
    loss3 = jax.block_until_ready(
        custom_cross_entropy_pallas(logits3, labels3, _max_block_elems=6 * 128))
    ref3 = _reference(logits3, labels3)
    assert jnp.allclose(loss3, ref3, atol=1e-5, rtol=1e-5), (loss3, ref3)

    print("KERNEL_OK")
</pallas_src>

<mosaic_0001>
module attributes {stable_mosaic.version = 11 : i64} {
  func.func @_xent_kernel(%arg0: i32, %arg1: i32, %arg2: i32, %arg3: memref<2x8x128xf32, #tpu.memory_space<vmem>>, %arg4: memref<2x1x128xi32, #tpu.memory_space<vmem>>, %arg5: memref<2x1x128xf32, #tpu.memory_space<vmem>>, %arg6: memref<2x1x128xf32, #tpu.memory_space<vmem>>, %arg7: memref<2x1x128xf32, #tpu.memory_space<vmem>>, %arg8: memref<2x1x128xf32, #tpu.memory_space<vmem>>) attributes {dimension_semantics = [#tpu.dimension_semantics<parallel>, #tpu.dimension_semantics<arbitrary>, #tpu.dimension_semantics<arbitrary>], iteration_bounds = array<i64: 1, 1, 1>, scalar_prefetch = 0 : i64, scratch_operands = 3 : i64, tpu.core_type = #tpu.core_type<tc>, window_params = [{transform_indices = @transform_0, window_bounds = array<i64: 2, 8, 128>}, {transform_indices = @transform_1, window_bounds = array<i64: 2, 1, 128>}, {transform_indices = @transform_2, window_bounds = array<i64: 2, 1, 128>}]} {
    %c0_i32 = arith.constant 0 : i32
    %0 = arith.cmpi eq, %arg2, %c0_i32 : i32
    %1 = arith.extui %0 : i1 to i32
    %c0_i32_0 = arith.constant 0 : i32
    %2 = arith.cmpi ne, %1, %c0_i32_0 : i32
    scf.if %2 {
      %cst_35 = arith.constant 0xFF800000 : f32
      %48 = vector.broadcast %cst_35 : f32 to vector<2x1x128xf32>
      %c0_36 = arith.constant 0 : index
      %c0_37 = arith.constant 0 : index
      %c0_38 = arith.constant 0 : index
      %49 = vector.load %arg6[%c0_36, %c0_37, %c0_38] : memref<2x1x128xf32, #tpu.memory_space<vmem>>, vector<2x1x128xf32>
      tpu.vector_store %arg6[%c0_36, %c0_37, %c0_38], %48 {strides = array<i32>} : memref<2x1x128xf32, #tpu.memory_space<vmem>>, vector<2x1x128xf32>,
      %cst_39 = arith.constant 0.000000e+00 : f32
      %50 = vector.broadcast %cst_39 : f32 to vector<2x1x128xf32>
      %c0_40 = arith.constant 0 : index
      %c0_41 = arith.constant 0 : index
      %c0_42 = arith.constant 0 : index
      %51 = vector.load %arg7[%c0_40, %c0_41, %c0_42] : memref<2x1x128xf32, #tpu.memory_space<vmem>>, vector<2x1x128xf32>
      tpu.vector_store %arg7[%c0_40, %c0_41, %c0_42], %50 {strides = array<i32>} : memref<2x1x128xf32, #tpu.memory_space<vmem>>, vector<2x1x128xf32>,
      %cst_43 = arith.constant 0.000000e+00 : f32
      %52 = vector.broadcast %cst_43 : f32 to vector<2x1x128xf32>
      %c0_44 = arith.constant 0 : index
      %c0_45 = arith.constant 0 : index
      %c0_46 = arith.constant 0 : index
      %53 = vector.load %arg8[%c0_44, %c0_45, %c0_46] : memref<2x1x128xf32, #tpu.memory_space<vmem>>, vector<2x1x128xf32>
      tpu.vector_store %arg8[%c0_44, %c0_45, %c0_46], %52 {strides = array<i32>} : memref<2x1x128xf32, #tpu.memory_space<vmem>>, vector<2x1x128xf32>,
    } else {
    }
    %c0_i32_1 = arith.constant 0 : i32
    %3 = arith.cmpi eq, %arg2, %c0_i32_1 : i32
    %c0_i32_2 = arith.constant 0 : i32
    %4 = arith.cmpi eq, %arg1, %c0_i32_2 : i32
    %5 = arith.andi %3, %4 : i1
    %6 = arith.extui %5 : i1 to i32
    %c0_i32_3 = arith.constant 0 : i32
    %7 = arith.cmpi ne, %6, %c0_i32_3 : i32
    scf.if %7 {
      %cst_35 = arith.constant 0.000000e+00 : f32
      %48 = vector.broadcast %cst_35 : f32 to vector<2x1x128xf32>
      %c0_36 = arith.constant 0 : index
      %c0_37 = arith.constant 0 : index
      %c0_38 = arith.constant 0 : index
      %49 = vector.load %arg5[%c0_36, %c0_37, %c0_38] : memref<2x1x128xf32, #tpu.memory_space<vmem>>, vector<2x1x128xf32>
      tpu.vector_store %arg5[%c0_36, %c0_37, %c0_38], %48 {strides = array<i32>} : memref<2x1x128xf32, #tpu.memory_space<vmem>>, vector<2x1x128xf32>,
    } else {
    }
    %c0 = arith.constant 0 : index
    %c0_4 = arith.constant 0 : index
    %c0_5 = arith.constant 0 : index
    %8 = vector.load %arg3[%c0, %c0_4, %c0_5] : memref<2x8x128xf32, #tpu.memory_space<vmem>>, vector<2x8x128xf32>
    %c0_6 = arith.constant 0 : index
    %c0_7 = arith.constant 0 : index
    %c0_8 = arith.constant 0 : index
    %9 = vector.load %arg4[%c0_6, %c0_7, %c0_8] : memref<2x1x128xi32, #tpu.memory_space<vmem>>, vector<2x1x128xi32>
    %c8_i32 = arith.constant 8 : i32
    %10 = arith.muli %arg2, %c8_i32 : i32
    %11 = tpu.iota {dimensions = array<i32: 1>} : vector<2x8x128xi32>
    %12 = vector.broadcast %10 : i32 to vector<2x8x128xi32>
    %13 = arith.addi %12, %11 : vector<2x8x128xi32>
    %c0_9 = arith.constant 0 : index
    %c0_10 = arith.constant 0 : index
    %c0_11 = arith.constant 0 : index
    %14 = vector.load %arg6[%c0_9, %c0_10, %c0_11] : memref<2x1x128xf32, #tpu.memory_space<vmem>>, vector<2x1x128xf32>
    %cst = arith.constant dense<0xFF800000> : vector<2x128xf32>
    %15 = vector.multi_reduction <maximumf>, %8, %cst [1] : vector<2x8x128xf32> to vector<2x128xf32>
    %16 = vector.shape_cast %15 : vector<2x128xf32> to vector<2x1x128xf32>
    %17 = arith.maximumf %14, %16 : vector<2x1x128xf32>
    %c0_12 = arith.constant 0 : index
    %c0_13 = arith.constant 0 : index
    %c0_14 = arith.constant 0 : index
    %18 = vector.load %arg7[%c0_12, %c0_13, %c0_14] : memref<2x1x128xf32, #tpu.memory_space<vmem>>, vector<2x1x128xf32>
    %19 = arith.subf %14, %17 : vector<2x1x128xf32>
    %20 = math.exp %19 : vector<2x1x128xf32>
    %21 = arith.mulf %18, %20 : vector<2x1x128xf32>
    %22 = vector.broadcast %17 : vector<2x1x128xf32> to vector<2x8x128xf32>
    %23 = arith.subf %8, %22 : vector<2x8x128xf32>
    %24 = math.exp %23 : vector<2x8x128xf32>
    %cst_15 = arith.constant dense<0.000000e+00> : vector<2x128xf32>
    %25 = vector.multi_reduction <add>, %24, %cst_15 [1] : vector<2x8x128xf32> to vector<2x128xf32>
    %26 = vector.shape_cast %25 : vector<2x128xf32> to vector<2x1x128xf32>
    %27 = arith.addf %21, %26 : vector<2x1x128xf32>
    %c0_16 = arith.constant 0 : index
    %c0_17 = arith.constant 0 : index
    %c0_18 = arith.constant 0 : index
    %28 = vector.load %arg7[%c0_16, %c0_17, %c0_18] : memref<2x1x128xf32, #tpu.memory_space<vmem>>, vector<2x1x128xf32>
    tpu.vector_store %arg7[%c0_16, %c0_17, %c0_18], %27 {strides = array<i32>} : memref<2x1x128xf32, #tpu.memory_space<vmem>>, vector<2x1x128xf32>,
    %c0_19 = arith.constant 0 : index
    %c0_20 = arith.constant 0 : index
    %c0_21 = arith.constant 0 : index
    %29 = vector.load %arg6[%c0_19, %c0_20, %c0_21] : memref<2x1x128xf32, #tpu.memory_space<vmem>>, vector<2x1x128xf32>
    tpu.vector_store %arg6[%c0_19, %c0_20, %c0_21], %17 {strides = array<i32>} : memref<2x1x128xf32, #tpu.memory_space<vmem>>, vector<2x1x128xf32>,
    %c0_22 = arith.constant 0 : index
    %c0_23 = arith.constant 0 : index
    %c0_24 = arith.constant 0 : index
    %30 = vector.load %arg8[%c0_22, %c0_23, %c0_24] : memref<2x1x128xf32, #tpu.memory_space<vmem>>, vector<2x1x128xf32>
    %31 = vector.broadcast %9 : vector<2x1x128xi32> to vector<2x8x128xi32>
    %32 = arith.cmpi eq, %13, %31 : vector<2x8x128xi32>
    %cst_25 = arith.constant 0.000000e+00 : f32
    %33 = vector.broadcast %cst_25 : f32 to vector<2x8x128xf32>
    %34 = arith.select %32, %8, %33 : vector<2x8x128xi1>, vector<2x8x128xf32>
    %cst_26 = arith.constant dense<0.000000e+00> : vector<2x128xf32>
    %35 = vector.multi_reduction <add>, %34, %cst_26 [1] : vector<2x8x128xf32> to vector<2x128xf32>
    %36 = vector.shape_cast %35 : vector<2x128xf32> to vector<2x1x128xf32>
    %37 = arith.addf %30, %36 : vector<2x1x128xf32>
    %c0_27 = arith.constant 0 : index
    %c0_28 = arith.constant 0 : index
    %c0_29 = arith.constant 0 : index
    %38 = vector.load %arg8[%c0_27, %c0_28, %c0_29] : memref<2x1x128xf32, #tpu.memory_space<vmem>>, vector<2x1x128xf32>
    tpu.vector_store %arg8[%c0_27, %c0_28, %c0_29], %37 {strides = array<i32>} : memref<2x1x128xf32, #tpu.memory_space<vmem>>, vector<2x1x128xf32>,
    %c0_i32_30 = arith.constant 0 : i32
    %39 = arith.cmpi eq, %arg2, %c0_i32_30 : i32
    %c0_i32_31 = arith.constant 0 : i32
    %40 = arith.cmpi ne, %arg1, %c0_i32_31 : i32
    %41 = arith.andi %39, %40 : i1
    %42 = arith.extui %41 : i1 to i32
    %c0_i32_32 = arith.constant 0 : i32
    %43 = arith.cmpi ne, %42, %c0_i32_32 : i32
    scf.if %43 {
      %c0_35 = arith.constant 0 : index
      %c0_36 = arith.constant 0 : index
      %c0_37 = arith.constant 0 : index
      %48 = vector.load %arg5[%c0_35, %c0_36, %c0_37] : memref<2x1x128xf32, #tpu.memory_space<vmem>>, vector<2x1x128xf32>
      %c0_38 = arith.constant 0 : index
      %c0_39 = arith.constant 0 : index
      %c0_40 = arith.constant 0 : index
      %49 = vector.load %arg8[%c0_38, %c0_39, %c0_40] : memref<2x1x128xf32, #tpu.memory_space<vmem>>, vector<2x1x128xf32>
      %c0_41 = arith.constant 0 : index
      %c0_42 = arith.constant 0 : index
      %c0_43 = arith.constant 0 : index
      %50 = vector.load %arg6[%c0_41, %c0_42, %c0_43] : memref<2x1x128xf32, #tpu.memory_space<vmem>>, vector<2x1x128xf32>
      %51 = arith.subf %49, %50 : vector<2x1x128xf32>
      %c0_44 = arith.constant 0 : index
      %c0_45 = arith.constant 0 : index
      %c0_46 = arith.constant 0 : index
      %52 = vector.load %arg7[%c0_44, %c0_45, %c0_46] : memref<2x1x128xf32, #tpu.memory_space<vmem>>, vector<2x1x128xf32>
      %53 = math.log %52 : vector<2x1x128xf32>
      %54 = arith.subf %51, %53 : vector<2x1x128xf32>
      %55 = arith.addf %48, %54 : vector<2x1x128xf32>
      %c0_47 = arith.constant 0 : index
      %c0_48 = arith.constant 0 : index
      %c0_49 = arith.constant 0 : index
      %56 = vector.load %arg5[%c0_47, %c0_48, %c0_49] : memref<2x1x128xf32, #tpu.memory_space<vmem>>, vector<2x1x128xf32>
      tpu.vector_store %arg5[%c0_47, %c0_48, %c0_49], %55 {strides = array<i32>} : memref<2x1x128xf32, #tpu.memory_space<vmem>>, vector<2x1x128xf32>,
    } else {
    }
    %c0_i32_33 = arith.constant 0 : i32
    %44 = arith.cmpi eq, %arg1, %c0_i32_33 : i32
    %45 = arith.andi %39, %44 : i1
    %46 = arith.extui %45 : i1 to i32
    %c0_i32_34 = arith.constant 0 : i32
    %47 = arith.cmpi ne, %46, %c0_i32_34 : i32
    scf.if %47 {
      %c0_35 = arith.constant 0 : index
      %c0_36 = arith.constant 0 : index
      %c0_37 = arith.constant 0 : index
      %48 = vector.load %arg8[%c0_35, %c0_36, %c0_37] : memref<2x1x128xf32, #tpu.memory_space<vmem>>, vector<2x1x128xf32>
      %c0_38 = arith.constant 0 : index
      %c0_39 = arith.constant 0 : index
      %c0_40 = arith.constant 0 : index
      %49 = vector.load %arg6[%c0_38, %c0_39, %c0_40] : memref<2x1x128xf32, #tpu.memory_space<vmem>>, vector<2x1x128xf32>
      %50 = arith.subf %48, %49 : vector<2x1x128xf32>
      %c0_41 = arith.constant 0 : index
      %c0_42 = arith.constant 0 : index
      %c0_43 = arith.constant 0 : index
      %51 = vector.load %arg7[%c0_41, %c0_42, %c0_43] : memref<2x1x128xf32, #tpu.memory_space<vmem>>, vector<2x1x128xf32>
      %52 = math.log %51 : vector<2x1x128xf32>
      %53 = arith.subf %50, %52 : vector<2x1x128xf32>
      %54 = tpu.iota {dimensions = array<i32: 2>} : vector<2x1x128xi32>
      %c128_i32 = arith.constant 128 : i32
      %55 = arith.muli %arg1, %c128_i32 : i32
      %56 = vector.broadcast %55 : i32 to vector<2x1x128xi32>
      %57 = arith.addi %56, %54 : vector<2x1x128xi32>
      %c16_i32 = arith.constant 16 : i32
      %58 = vector.broadcast %c16_i32 : i32 to vector<2x1x128xi32>
      %59 = arith.cmpi slt, %57, %58 : vector<2x1x128xi32>
      %c0_44 = arith.constant 0 : index
      %c0_45 = arith.constant 0 : index
      %c0_46 = arith.constant 0 : index
      %60 = vector.load %arg5[%c0_44, %c0_45, %c0_46] : memref<2x1x128xf32, #tpu.memory_space<vmem>>, vector<2x1x128xf32>
      %cst_47 = arith.constant 0.000000e+00 : f32
      %61 = vector.broadcast %cst_47 : f32 to vector<2x1x128xf32>
      %62 = arith.select %59, %53, %61 : vector<2x1x128xi1>, vector<2x1x128xf32>
      %63 = arith.addf %60, %62 : vector<2x1x128xf32>
      %c0_48 = arith.constant 0 : index
      %c0_49 = arith.constant 0 : index
      %c0_50 = arith.constant 0 : index
      %64 = vector.load %arg5[%c0_48, %c0_49, %c0_50] : memref<2x1x128xf32, #tpu.memory_space<vmem>>, vector<2x1x128xf32>
      tpu.vector_store %arg5[%c0_48, %c0_49, %c0_50], %63 {strides = array<i32>} : memref<2x1x128xf32, #tpu.memory_space<vmem>>, vector<2x1x128xf32>,
    } else {
    }
    return
  }
  func.func @transform_0(%arg0: i32, %arg1: i32, %arg2: i32) -> (i32, i32, i32) {
    %c0_i32 = arith.constant 0 : i32
    return %arg0, %arg2, %arg1 : i32, i32, i32
  }
  func.func @transform_1(%arg0: i32, %arg1: i32, %arg2: i32) -> (i32, i32, i32) {
    %c0_i32 = arith.constant 0 : i32
    %c0_i32_0 = arith.constant 0 : i32
    return %arg0, %c0_i32, %arg1 : i32, i32, i32
  }
  func.func @transform_2(%arg0: i32, %arg1: i32, %arg2: i32) -> (i32, i32, i32) {
    %c0_i32 = arith.constant 0 : i32
    %c0_i32_0 = arith.constant 0 : i32
    %c0_i32_1 = arith.constant 0 : i32
    return %arg0, %c0_i32, %c0_i32_0 : i32, i32, i32
  }
}

</mosaic_0001>

<llo_original>
// kernel: tpu_custom_call.1
$region0: #{tpu_custom_call.1}
  #allocation0 [shape = 'u32[]', space=smem, size = 0x4, offset = 0x4, fixed_abs, tag = 'smem constant byte address 0x4 - core index']
  #allocation1 [shape = 'u32[144,128]{1,0:T(1,128)}', space=vmem, size = 0x12000, scoped, tag = 'internal scratch']
  #allocation2 [shape = 'f32[2,1,128]{2,1,0:T(1,128)}', space=vmem, size = 0x400, scoped, tag = 'scratch operand']
  #allocation3 [shape = 'f32[2,1,128]{2,1,0:T(1,128)}', space=vmem, size = 0x400, scoped, tag = 'scratch operand']
  #allocation4 [shape = 'f32[2,1,128]{2,1,0:T(1,128)}', space=vmem, size = 0x400, scoped, tag = 'scratch operand']
  %s0 = inlined_call_operand.hbm [shape: f32[2,8,16], index: 0, kind: input, shape index: {}]
  %s1 = inlined_call_operand.vmem [shape: s32[2,1,16], index: 1, kind: input, shape index: {}]
  %s2 = inlined_call_operand.hbm [shape: f32[2,1,128], index: 2, kind: output, shape index: {}]
  %s3 = sld [smem:[#allocation0]]
  $region38: #{tpu_custom_call.1} parent=0
    _
  %s5 = ssub.s32 1, %s3
  %s6 = scalar_select 0, %s5, %s3
  $region1: #{tpu_custom_call.1} parent=0
    #allocation5 [shape = 'u8[8192]{0}', space=vmem, size = 0x2000, scoped, tag = 'input window, operand 0, single buffered']
    #allocation6 [shape = 's32[1]{0}', space=sflag, size = 0x4, scoped, tag = 'scoped memory for tpu_custom_call.1']
    #allocation7 [shape = 's32[1]{0}', space=sflag, size = 0x4, scoped, tag = 'scoped memory for tpu_custom_call.1']
    #allocation8 [shape = 'u8[1024]{0}', space=vmem, size = 0x400, scoped, tag = 'output window, operand 0, single buffered']
    %7 = vsyncpa [#allocation6], 0
    %8 = vsyncpa [#allocation7], 0
    // Predicated region
    $region2: #{tpu_custom_call.1} parent=1 // pred_check
      _
    $region3: #{tpu_custom_call.1} parent=1 // pred_check_branch
      %10 = sbr.rel (0) target = $region5
    $region4: #{tpu_custom_call.1} parent=1 // pred_region
      %s12 = ssub.s32 256, 256
      %13 = vsyncadd [#allocation6], %s12
      %s14 = sshll.u32 [#allocation5], 4
      %s15 = int_to_ptr.vmem [resolvable:$true] %s14
      %20 = dma.hbm_to_vmem [thread:$0]  %s0, 256, %s15, [#allocation6], 128, 128, 8
    $region5: #{tpu_custom_call.1} parent=1 // pred_fallthru
      _
    // Predicated region
    $region6: #{tpu_custom_call.1} parent=1 // pred_check
      _
    $region7: #{tpu_custom_call.1} parent=1 // pred_check_branch
      %22 = sbr.rel (0) target = $region9
    $region8: #{tpu_custom_call.1} parent=1 // pred_region
      _
    $region9: #{tpu_custom_call.1} parent=1 // pred_fallthru
      _
    // Predicated region
    $region10: #{tpu_custom_call.1} parent=1 // pred_check
      _
    $region11: #{tpu_custom_call.1} parent=1 // pred_check_branch
      %24 = sbr.rel (0) target = $region13
    $region12: #{tpu_custom_call.1} parent=1 // pred_region
      %25 = dma.done [#allocation6], 256
    $region13: #{tpu_custom_call.1} parent=1 // pred_fallthru
      _
    %p26 = scmp.eq.s32.totalorder 0, 0
    // Predicated region
    $region14: #{tpu_custom_call.1} parent=1 // pred_check
      %p27 = pneg %p26
    $region15: #{tpu_custom_call.1} parent=1 // pred_check_branch
      %29 = sbr.rel (%p27) target = $region17
    $region16: #{tpu_custom_call.1} parent=1 // pred_region
      %30 = vst [vmem:[#allocation2] sm:$0x1] -inf
      %31 = vst [vmem:[#allocation2 + $0x1] sm:$0x1] -inf
      %32 = vst [vmem:[#allocation3] sm:$0x1] 0.0
      %33 = vst [vmem:[#allocation3 + $0x1] sm:$0x1] 0.0
      %34 = vst [vmem:[#allocation4] sm:$0x1] 0.0
      %35 = vst [vmem:[#allocation4 + $0x1] sm:$0x1] 0.0
    $region17: #{tpu_custom_call.1} parent=1 // pred_fallthru
      _
    %p36 = scmp.eq.s32.totalorder 0, 0
    %p37 = pnand %p26, %p36
    %p38 = pneg %p37
    // Predicated region
    $region18: #{tpu_custom_call.1} parent=1 // pred_check
      _
    $region19: #{tpu_custom_call.1} parent=1 // pred_check_branch
      %40 = sbr.rel (%p37) target = $region21
    $region20: #{tpu_custom_call.1} parent=1 // pred_region
      %41 = vst [vmem:[#allocation8] sm:$0x1] 0.0
      %42 = vst [vmem:[#allocation8 + $0x1] sm:$0x1] 0.0
    $region21: #{tpu_custom_call.1} parent=1 // pred_fallthru
      _
    %v43 = vld [vmem:[#allocation5] sm:$0xff]
    %v44 = vld [vmem:[#allocation5 + $0x8] sm:$0xff]
    %v45 = vld [vmem:[%s1] sm:$0x1]
    %v46 = vld [vmem:[%s1 + $0x1] sm:$0x1]
    %s47 = smul.u32 0, 8
    %v48 = vlaneseq
    %v49 = vshrl.u32 %v48, 7
    %v50 = vstv %s47
    %v51 = vadd.s32 %v50, %v49
    %v52 = vld [vmem:[#allocation2] sm:$0x1]
    %v53 = vld [vmem:[#allocation2 + $0x1] sm:$0x1]
    %v54 = vrot.slane %v43, 4
    %v55 = vmax.f32 %v43, %v54
    %v56 = vrot.slane %v55, 2
    %v57 = vmax.f32 %v55, %v56
    %v58 = vrot.slane %v57, 1
    %v59 = vmax.f32 %v57, %v58
    %v60 = vrot.slane %v44, 4
    %v61 = vmax.f32 %v44, %v60
    %v62 = vrot.slane %v61, 2
    %v63 = vmax.f32 %v61, %v62
    %v64 = vrot.slane %v63, 1
    %v65 = vmax.f32 %v63, %v64
    %v66 = vmax.f32 %v52, %v59
    %v67 = vmax.f32 %v53, %v65
    %v68 = vld [vmem:[#allocation3] sm:$0x1]
    %v69 = vld [vmem:[#allocation3 + $0x1] sm:$0x1]
    %v70 = vsub.f32 %v52, %v66
    %v71 = vsub.f32 %v53, %v67
    %v72 = vmul.f32 %v70, 1.442695
    %v73 = vpow.pop %v72
    %v74 = vmul.f32 %v71, 1.442695
    %v75 = vpow.pop %v74
    %v76 = vmul.f32 %v68, %v73
    %v77 = vmul.f32 %v69, %v75
    %v80 = vlaneseq
    %v81 = vshrl.u32 %v80, 7
    %v82 = vsub.s32 0, %v81
    %v83 = vrot.slane %v66, %v82
    %v84 = vlaneseq
    %v85 = vshrl.u32 %v84, 7
    %v86 = vsub.s32 0, %v85
    %v87 = vrot.slane %v67, %v86
    %v90 = vsub.f32 %v43, %v83
    %v91 = vsub.f32 %v44, %v87
    %v92 = vmul.f32 %v90, 1.442695
    %v93 = vpow.pop %v92
    %v94 = vmul.f32 %v91, 1.442695
    %v95 = vpow.pop %v94
    %v96 = vrot.slane %v93, 4
    %v97 = vadd.f32 %v93, %v96
    %v98 = vrot.slane %v97, 2
    %v99 = vadd.f32 %v97, %v98
    %v100 = vrot.slane %v99, 1
    %v101 = vadd.f32 %v99, %v100
    %v102 = vrot.slane %v95, 4
    %v103 = vadd.f32 %v95, %v102
    %v104 = vrot.slane %v103, 2
    %v105 = vadd.f32 %v103, %v104
    %v106 = vrot.slane %v105, 1
    %v107 = vadd.f32 %v105, %v106
    %v108 = vadd.f32 %v76, %v101
    %v109 = vadd.f32 %v77, %v107
    %110 = vst [vmem:[#allocation3] sm:$0x1] %v108
    %111 = vst [vmem:[#allocation3 + $0x1] sm:$0x1] %v109
    %112 = vst [vmem:[#allocation2] sm:$0x1] %v66
    %113 = vst [vmem:[#allocation2 + $0x1] sm:$0x1] %v67
    %v114 = vld [vmem:[#allocation4] sm:$0x1]
    %v115 = vld [vmem:[#allocation4 + $0x1] sm:$0x1]
    %v116 = vlaneseq
    %v117 = vshrl.u32 %v116, 7
    %v118 = vsub.s32 0, %v117
    %v119 = vrot.slane %v45, %v118
    %v120 = vlaneseq
    %v121 = vshrl.u32 %v120, 7
    %v122 = vsub.s32 0, %v121
    %v123 = vrot.slane %v46, %v122
    %vm124 = vcmp.eq.s32.totalorder %v51, %v119
    %vm125 = vcmp.eq.s32.totalorder %v51, %v123
    %v126 = vsel %vm124, %v43, 0.0
    %v127 = vsel %vm125, %v44, 0.0
    %v128 = vrot.slane %v126, 4
    %v129 = vadd.f32 %v126, %v128
    %v130 = vrot.slane %v129, 2
    %v131 = vadd.f32 %v129, %v130
    %v132 = vrot.slane %v131, 1
    %v133 = vadd.f32 %v131, %v132
    %v134 = vrot.slane %v127, 4
    %v135 = vadd.f32 %v127, %v134
    %v136 = vrot.slane %v135, 2
    %v137 = vadd.f32 %v135, %v136
    %v138 = vrot.slane %v137, 1
    %v139 = vadd.f32 %v137, %v138
    %v140 = vadd.f32 %v114, %v133
    %v141 = vadd.f32 %v115, %v139
    %142 = vst [vmem:[#allocation4] sm:$0x1] %v140
    %143 = vst [vmem:[#allocation4 + $0x1] sm:$0x1] %v141
    %p144 = scmp.ne.s32.totalorder 0, 0
    %p145 = pnand %p26, %p144
    %p146 = pneg %p145
    // Predicated region
    $region22: #{tpu_custom_call.1} parent=1 // pred_check
      _
    $region23: #{tpu_custom_call.1} parent=1 // pred_check_branch
      %148 = sbr.rel (%p145) target = $region25
    $region24: #{tpu_custom_call.1} parent=1 // pred_region
      %v149 = vld [vmem:[#allocation8] sm:$0x1]
      %v150 = vld [vmem:[#allocation8 + $0x1] sm:$0x1]
      %v151 = vld [vmem:[#allocation4] sm:$0x1]
      %v152 = vld [vmem:[#allocation4 + $0x1] sm:$0x1]
      %v153 = vld [vmem:[#allocation2] sm:$0x1]
      %v154 = vld [vmem:[#allocation2 + $0x1] sm:$0x1]
      %v155 = vsub.f32 %v151, %v153
      %v156 = vsub.f32 %v152, %v154
      %v157 = vld [vmem:[#allocation3] sm:$0x1]
      %v158 = vld [vmem:[#allocation3 + $0x1] sm:$0x1]
      %v159 = vlog2.pop %v157
      %v160 = vmul.f32 %v159, 0.6931472
      %v161 = vlog2.pop %v158
      %v162 = vmul.f32 %v161, 0.6931472
      %v163 = vsub.f32 %v155, %v160
      %v164 = vsub.f32 %v156, %v162
      %v165 = vadd.f32 %v149, %v163
      %v166 = vadd.f32 %v150, %v164
      %167 = vst [vmem:[#allocation8] sm:$0x1] %v165
      %168 = vst [vmem:[#allocation8 + $0x1] sm:$0x1] %v166
    $region25: #{tpu_custom_call.1} parent=1 // pred_fallthru
      _
    // Predicated region
    $region26: #{tpu_custom_call.1} parent=1 // pred_check
      _
    $region27: #{tpu_custom_call.1} parent=1 // pred_check_branch
      %170 = sbr.rel (%p37) target = $region29
    $region28: #{tpu_custom_call.1} parent=1 // pred_region
      %v171 = vld [vmem:[#allocation4] sm:$0x1]
      %v172 = vld [vmem:[#allocation4 + $0x1] sm:$0x1]
      %v173 = vld [vmem:[#allocation2] sm:$0x1]
      %v174 = vld [vmem:[#allocation2 + $0x1] sm:$0x1]
      %v175 = vsub.f32 %v171, %v173
      %v176 = vsub.f32 %v172, %v174
      %v177 = vld [vmem:[#allocation3] sm:$0x1]
      %v178 = vld [vmem:[#allocation3 + $0x1] sm:$0x1]
      %v179 = vlog2.pop %v177
      %v180 = vmul.f32 %v179, 0.6931472
      %v181 = vlog2.pop %v178
      %v182 = vmul.f32 %v181, 0.6931472
      %v183 = vsub.f32 %v175, %v180
      %v184 = vsub.f32 %v176, %v182
      %v185 = vlaneseq
      %v186 = vand.u32 %v185, 127
      %s187 = smul.u32 0, 128
      %v188 = vstv %s187
      %v189 = vadd.s32 %v188, %v186
      %vm190 = vcmp.lt.s32.totalorder %v189, 16
      %v191 = vld [vmem:[#allocation8] sm:$0x1]
      %v192 = vld [vmem:[#allocation8 + $0x1] sm:$0x1]
      %v193 = vsel %vm190, %v183, 0.0
      %v194 = vsel %vm190, %v184, 0.0
      %v195 = vadd.f32 %v191, %v193
      %v196 = vadd.f32 %v192, %v194
      %197 = vst [vmem:[#allocation8] sm:$0x1] %v195
      %198 = vst [vmem:[#allocation8 + $0x1] sm:$0x1] %v196
    $region29: #{tpu_custom_call.1} parent=1 // pred_fallthru
      _
    // Predicated region
    $region30: #{tpu_custom_call.1} parent=1 // pred_check
      _
    $region31: #{tpu_custom_call.1} parent=1 // pred_check_branch
      %200 = sbr.rel (0) target = $region33
    $region32: #{tpu_custom_call.1} parent=1 // pred_region
      %s202 = ssub.s32 32, 32
      %203 = vsyncadd [#allocation7], %s202
      %s204 = sshll.u32 [#allocation8], 4
      %s205 = int_to_ptr.vmem [resolvable:$true] %s204
      %210 = dma.vmem_to_hbm [thread:$0]  %s205, 32, %s2, [#allocation7], 16, 16, 1
    $region33: #{tpu_custom_call.1} parent=1 // pred_fallthru
      _
    // Predicated region
    $region34: #{tpu_custom_call.1} parent=1 // pred_check
      _
    $region35: #{tpu_custom_call.1} parent=1 // pred_check_branch
      %212 = sbr.rel (0) target = $region37
    $region36: #{tpu_custom_call.1} parent=1 // pred_region
      %213 = dma.done [#allocation7], 32
    $region37: #{tpu_custom_call.1} parent=1 // pred_fallthru
      _
    %214 = vsyncpa [#allocation6], 1
    %215 = vsyncpa [#allocation7], 1

</llo_original>
